<compile_context>
chip_gen: v7x
topology: tpu7x:2x2x1
jax: 0.10.0
libtpu: 0.0.40
codegen_flags: <defaults>
</compile_context>

<pallas_src>
import jax
import jax.numpy as jnp
from jax.experimental import pallas as pl
from jax.experimental.pallas import tpu as pltpu


def _make_densenet_kernel(C, use_mxu):
    """Build the kernel body; `use_mxu` selects MXU matmuls vs unrolled VPU mixing."""

    def channel_mix(w, b, h):
        # w: (C, C), b: (C, 1), h: (C, TT)  ->  (C, TT)
        if use_mxu:
            # bf16 operands, f32 accumulate: native MXU throughput on v6e/v7x.
            # (Weights are pre-oriented once in the wrapper; nothing to transpose
            # per grid step.)
            return jnp.dot(w, h.astype(jnp.bfloat16),
                           preferred_element_type=jnp.float32) + b
        # Small C: the MXU would be >99% idle; do an unrolled broadcast-multiply-add
        # on the VPU (C outer-product accumulations of (C,1)*(1,TT)).
        acc = w[:, 0:1] * h[0:1, :]
        for c in range(1, C):
            acc = acc + w[:, c:c + 1] * h[c:c + 1, :]
        return acc + b

    def kernel(x_ref, w1_ref, b1_ref, w2_ref, b2_ref, o_ref):
        # x_ref / o_ref: (1, C, TT) tile of the native (N, C, T) tensor.
        x = x_ref[0]                                   # (C, TT) f32
        h = jnp.maximum(x, 0.0)                        # ReLU
        h = channel_mix(w1_ref[...], b1_ref[...], h)   # conv1 (1x1)
        h = jnp.maximum(h, 0.0)                        # ReLU
        h = channel_mix(w2_ref[...], b2_ref[...], h)   # conv2 (1x1)
        # Softmax over channels (axis 0 = sublanes); every time column independent.
        # NOTE: for a partial last time block the tail lanes hold garbage; this is
        # safe only because the softmax is strictly per-column and the partial
        # output store is masked to the valid region.
        m = jnp.max(h, axis=0, keepdims=True)
        e = jnp.exp(h - m)
        denom = jnp.sum(e, axis=0, keepdims=True)
        inv = 1.0 / denom                              # exact: columns sum to 1
        o_ref[0] = (e * inv).astype(o_ref.dtype)

    return kernel


def _pick_time_tile(N, C, T, x_bytes, out_bytes, w_bytes):
    """Pick a lane-dense time tile TT (multiple of 128, or the full T extent).

    Budget: 2 pipeline buffers x (x tile + out tile) + worst-case double-buffered
    weights kept under ~40 MiB -> fits v7x's 64 MiB VMEM and the explicitly
    raised scoped limit on v5e/v6e, with headroom for spills/internal scratch.
    Then split further so the grid has >= 4 steps (2-TC megacore sharding and a
    pipeline that reaches steady state) whenever tiles can stay >= 128 lanes.
    """
    LANE = 128
    budget = 40 * 1024 * 1024
    weight_bytes = 2 * (2 * C * C * w_bytes) + 2 * (2 * C * 4)
    avail = max(budget - weight_bytes, 4 * 1024 * 1024)
    per_lane = 2 * C * (x_bytes + out_bytes)            # double-buffered x + out
    cap = max(LANE, (avail // per_lane) // LANE * LANE)
    cap = min(cap, 2048)                                 # per-step overhead amortized by 512+
    tt = T if T <= cap else cap
    while N * ((T + tt - 1) // tt) < 4:
        half = (tt // 2) // LANE * LANE
        if half < LANE:
            break
        tt = half
    return tt


def densenet_forward(x_nct, w1, b1, w2, b2, out_dtype=jnp.float32):
    """x_nct: (N, C, T) f32.  w1/w2: Conv1d weights (C_out, C_in, 1), b1/b2: (C,)."""
    N, C, T = x_nct.shape

    use_mxu = C >= 32
    w_dtype = jnp.bfloat16 if use_mxu else jnp.float32

    # 1x1 conv weights as plain channel-mixing matrices (oriented once here, so no
    # per-step in-kernel transpose work); biases as column vectors so they
    # broadcast over the lane (time) axis in-kernel.
    w1_m = w1[:, :, 0].astype(w_dtype)
    w2_m = w2[:, :, 0].astype(w_dtype)
    b1_m = b1.reshape(C, 1).astype(jnp.float32)
    b2_m = b2.reshape(C, 1).astype(jnp.float32)

    def nbytes(dt):
        return jnp.dtype(dt).itemsize

    tt = _pick_time_tile(N, C, T,
                         x_bytes=nbytes(x_nct.dtype),
                         out_bytes=nbytes(out_dtype),
                         w_bytes=nbytes(w_dtype))
    grid = (N, pl.cdiv(T, tt))

    # Grid-invariant weights/biases: double-buffering them buys nothing. Drop to a
    # single buffer once the duplicated footprint is big enough to matter
    # (>= 1 MiB, i.e. C >= ~512 in bf16); at small C the default is negligible.
    single_buffer_weights = 2 * C * C * nbytes(w_dtype) >= (1 << 20)

    def const_spec(shape):
        if single_buffer_weights:
            return pl.BlockSpec(shape, lambda n, t: (0, 0),
                                pipeline_mode=pl.Buffered(1))
        return pl.BlockSpec(shape, lambda n, t: (0, 0))

    kernel = _make_densenet_kernel(C, use_mxu)

    return pl.pallas_call(
        kernel,
        out_shape=jax.ShapeDtypeStruct((N, C, T), out_dtype),
        grid_spec=pltpu.PrefetchScalarGridSpec(
            num_scalar_prefetch=0,
            grid=grid,
            in_specs=[
                pl.BlockSpec((1, C, tt), lambda n, t: (n, 0, t)),   # x tile
                const_spec((C, C)),                                 # W1
                const_spec((C, 1)),                                 # b1
                const_spec((C, C)),                                 # W2
                const_spec((C, 1)),                                 # b2
            ],
            out_specs=pl.BlockSpec((1, C, tt), lambda n, t: (n, 0, t)),
        ),
        compiler_params=pltpu.CompilerParams(
            # Both grid axes are fully independent -> megacore sharding on 2-TC parts.
            dimension_semantics=("parallel", "parallel"),
            # v5e's default scoped VMEM is only 16 MiB; stay under v7x's 64 MiB physical.
            vmem_limit_bytes=48 * 1024 * 1024,
        ),
    )(x_nct, w1_m, b1_m, w2_m, b2_m)


def densenet_ref(x_nct, w1, b1, w2, b2):
    """Pure-JAX reference matching the PyTorch forward."""
    h = jnp.maximum(x_nct, 0.0)
    h = jnp.einsum('nct,oc->not', h, w1[:, :, 0]) + b1[None, :, None]
    h = jnp.maximum(h, 0.0)
    h = jnp.einsum('nct,oc->not', h, w2[:, :, 0]) + b2[None, :, None]
    return jax.nn.softmax(h, axis=1)


def _run_case(key, N, C, T, w_scale, atol, rtol):
    k_x, k_w1, k_b1, k_w2, k_b2 = jax.random.split(key, 5)
    x = jax.random.normal(k_x, (N, C, T), dtype=jnp.float32)
    # Conv1d weight: (C_out, C_in, 1); bias: (C,)
    w1 = jax.random.normal(k_w1, (C, C, 1), dtype=jnp.float32) * w_scale
    b1 = jax.random.normal(k_b1, (C,), dtype=jnp.float32) * 0.1
    w2 = jax.random.normal(k_w2, (C, C, 1), dtype=jnp.float32) * w_scale
    b2 = jax.random.normal(k_b2, (C,), dtype=jnp.float32) * 0.1

    out = jax.block_until_ready(densenet_forward(x, w1, b1, w2, b2))
    ref = densenet_ref(x, w1, b1, w2, b2)
    assert out.shape == (N, C, T)
    assert jnp.allclose(out, ref, atol=atol, rtol=rtol), f"mismatch vs reference (C={C})"
    # softmax over the channel dim must sum to ~1 (exact divide in-kernel)
    assert jnp.allclose(jnp.sum(out, axis=1), 1.0, atol=1e-4), f"softmax not normalized (C={C})"


if __name__ == "__main__":
    key = jax.random.PRNGKey(0)
    k_small, k_big = jax.random.split(key)

    # Small shape (C=4): pure-VPU channel mix, full-T block, f32 throughout.
    _run_case(k_small, N=2, C=4, T=16, w_scale=0.5, atol=1e-4, rtol=1e-4)

    # Moderate shape (C=128): bf16 MXU path, multi-step (batch, time) grid.
    _run_case(k_big, N=2, C=128, T=512, w_scale=0.05, atol=1e-3, rtol=2e-2)

    print("KERNEL_OK")
</pallas_src>

<mosaic_0001>
module attributes {stable_mosaic.version = 11 : i64} {
  func.func @kernel(%arg0: i32, %arg1: i32, %arg2: memref<1x4x16xf32, #tpu.memory_space<vmem>>, %arg3: memref<4x4xf32, #tpu.memory_space<vmem>>, %arg4: memref<4x1xf32, #tpu.memory_space<vmem>>, %arg5: memref<4x4xf32, #tpu.memory_space<vmem>>, %arg6: memref<4x1xf32, #tpu.memory_space<vmem>>, %arg7: memref<1x4x16xf32, #tpu.memory_space<vmem>>) attributes {dimension_semantics = [#tpu.dimension_semantics<parallel>, #tpu.dimension_semantics<parallel>], iteration_bounds = array<i64: 2, 1>, scalar_prefetch = 0 : i64, scratch_operands = 0 : i64, tpu.core_type = #tpu.core_type<tc>, window_params = [{transform_indices = @transform_0, window_bounds = array<i64: 1, 4, 16>}, {pipeline_mode = #tpu.pipeline_mode<synchronous>, transform_indices = @transform_1, window_bounds = array<i64: 4, 4>}, {pipeline_mode = #tpu.pipeline_mode<synchronous>, transform_indices = @transform_2, window_bounds = array<i64: 4, 1>}, {pipeline_mode = #tpu.pipeline_mode<synchronous>, transform_indices = @transform_3, window_bounds = array<i64: 4, 4>}, {pipeline_mode = #tpu.pipeline_mode<synchronous>, transform_indices = @transform_4, window_bounds = array<i64: 4, 1>}, {transform_indices = @transform_5, window_bounds = array<i64: 1, 4, 16>}]} {
    %c0 = arith.constant 0 : index
    %c0_0 = arith.constant 0 : index
    %c0_1 = arith.constant 0 : index
    %0 = vector.load %arg2[%c0, %c0_0, %c0_1] : memref<1x4x16xf32, #tpu.memory_space<vmem>>, vector<1x4x16xf32>
    %1 = vector.shape_cast %0 : vector<1x4x16xf32> to vector<4x16xf32>
    %cst = arith.constant 0.000000e+00 : f32
    %2 = vector.broadcast %cst : f32 to vector<4x16xf32>
    %3 = arith.maximumf %1, %2 : vector<4x16xf32>
    %c0_2 = arith.constant 0 : index
    %c0_3 = arith.constant 0 : index
    %4 = vector.load %arg3[%c0_2, %c0_3] : memref<4x4xf32, #tpu.memory_space<vmem>>, vector<4x4xf32>
    %c0_4 = arith.constant 0 : index
    %c0_5 = arith.constant 0 : index
    %5 = vector.load %arg4[%c0_4, %c0_5] : memref<4x1xf32, #tpu.memory_space<vmem>>, vector<4x1xf32>
    %6 = vector.extract_strided_slice %4 {offsets = [0, 0], sizes = [4, 1], strides = [1, 1]} : vector<4x4xf32> to vector<4x1xf32>
    %7 = vector.extract_strided_slice %3 {offsets = [0, 0], sizes = [1, 16], strides = [1, 1]} : vector<4x16xf32> to vector<1x16xf32>
    %8 = vector.broadcast %6 : vector<4x1xf32> to vector<4x16xf32>
    %9 = vector.broadcast %7 : vector<1x16xf32> to vector<4x16xf32>
    %10 = arith.mulf %8, %9 : vector<4x16xf32>
    %11 = vector.extract_strided_slice %4 {offsets = [0, 1], sizes = [4, 1], strides = [1, 1]} : vector<4x4xf32> to vector<4x1xf32>
    %12 = vector.extract_strided_slice %3 {offsets = [1, 0], sizes = [1, 16], strides = [1, 1]} : vector<4x16xf32> to vector<1x16xf32>
    %13 = vector.broadcast %11 : vector<4x1xf32> to vector<4x16xf32>
    %14 = vector.broadcast %12 : vector<1x16xf32> to vector<4x16xf32>
    %15 = arith.mulf %13, %14 : vector<4x16xf32>
    %16 = arith.addf %10, %15 : vector<4x16xf32>
    %17 = vector.extract_strided_slice %4 {offsets = [0, 2], sizes = [4, 1], strides = [1, 1]} : vector<4x4xf32> to vector<4x1xf32>
    %18 = vector.extract_strided_slice %3 {offsets = [2, 0], sizes = [1, 16], strides = [1, 1]} : vector<4x16xf32> to vector<1x16xf32>
    %19 = vector.broadcast %17 : vector<4x1xf32> to vector<4x16xf32>
    %20 = vector.broadcast %18 : vector<1x16xf32> to vector<4x16xf32>
    %21 = arith.mulf %19, %20 : vector<4x16xf32>
    %22 = arith.addf %16, %21 : vector<4x16xf32>
    %23 = vector.extract_strided_slice %4 {offsets = [0, 3], sizes = [4, 1], strides = [1, 1]} : vector<4x4xf32> to vector<4x1xf32>
    %24 = vector.extract_strided_slice %3 {offsets = [3, 0], sizes = [1, 16], strides = [1, 1]} : vector<4x16xf32> to vector<1x16xf32>
    %25 = vector.broadcast %23 : vector<4x1xf32> to vector<4x16xf32>
    %26 = vector.broadcast %24 : vector<1x16xf32> to vector<4x16xf32>
    %27 = arith.mulf %25, %26 : vector<4x16xf32>
    %28 = arith.addf %22, %27 : vector<4x16xf32>
    %29 = vector.broadcast %5 : vector<4x1xf32> to vector<4x16xf32>
    %30 = arith.addf %28, %29 : vector<4x16xf32>
    %cst_6 = arith.constant 0.000000e+00 : f32
    %31 = vector.broadcast %cst_6 : f32 to vector<4x16xf32>
    %32 = arith.maximumf %30, %31 : vector<4x16xf32>
    %c0_7 = arith.constant 0 : index
    %c0_8 = arith.constant 0 : index
    %33 = vector.load %arg5[%c0_7, %c0_8] : memref<4x4xf32, #tpu.memory_space<vmem>>, vector<4x4xf32>
    %c0_9 = arith.constant 0 : index
    %c0_10 = arith.constant 0 : index
    %34 = vector.load %arg6[%c0_9, %c0_10] : memref<4x1xf32, #tpu.memory_space<vmem>>, vector<4x1xf32>
    %35 = vector.extract_strided_slice %33 {offsets = [0, 0], sizes = [4, 1], strides = [1, 1]} : vector<4x4xf32> to vector<4x1xf32>
    %36 = vector.extract_strided_slice %32 {offsets = [0, 0], sizes = [1, 16], strides = [1, 1]} : vector<4x16xf32> to vector<1x16xf32>
    %37 = vector.broadcast %35 : vector<4x1xf32> to vector<4x16xf32>
    %38 = vector.broadcast %36 : vector<1x16xf32> to vector<4x16xf32>
    %39 = arith.mulf %37, %38 : vector<4x16xf32>
    %40 = vector.extract_strided_slice %33 {offsets = [0, 1], sizes = [4, 1], strides = [1, 1]} : vector<4x4xf32> to vector<4x1xf32>
    %41 = vector.extract_strided_slice %32 {offsets = [1, 0], sizes = [1, 16], strides = [1, 1]} : vector<4x16xf32> to vector<1x16xf32>
    %42 = vector.broadcast %40 : vector<4x1xf32> to vector<4x16xf32>
    %43 = vector.broadcast %41 : vector<1x16xf32> to vector<4x16xf32>
    %44 = arith.mulf %42, %43 : vector<4x16xf32>
    %45 = arith.addf %39, %44 : vector<4x16xf32>
    %46 = vector.extract_strided_slice %33 {offsets = [0, 2], sizes = [4, 1], strides = [1, 1]} : vector<4x4xf32> to vector<4x1xf32>
    %47 = vector.extract_strided_slice %32 {offsets = [2, 0], sizes = [1, 16], strides = [1, 1]} : vector<4x16xf32> to vector<1x16xf32>
    %48 = vector.broadcast %46 : vector<4x1xf32> to vector<4x16xf32>
    %49 = vector.broadcast %47 : vector<1x16xf32> to vector<4x16xf32>
    %50 = arith.mulf %48, %49 : vector<4x16xf32>
    %51 = arith.addf %45, %50 : vector<4x16xf32>
    %52 = vector.extract_strided_slice %33 {offsets = [0, 3], sizes = [4, 1], strides = [1, 1]} : vector<4x4xf32> to vector<4x1xf32>
    %53 = vector.extract_strided_slice %32 {offsets = [3, 0], sizes = [1, 16], strides = [1, 1]} : vector<4x16xf32> to vector<1x16xf32>
    %54 = vector.broadcast %52 : vector<4x1xf32> to vector<4x16xf32>
    %55 = vector.broadcast %53 : vector<1x16xf32> to vector<4x16xf32>
    %56 = arith.mulf %54, %55 : vector<4x16xf32>
    %57 = arith.addf %51, %56 : vector<4x16xf32>
    %58 = vector.broadcast %34 : vector<4x1xf32> to vector<4x16xf32>
    %59 = arith.addf %57, %58 : vector<4x16xf32>
    %cst_11 = arith.constant dense<0xFF800000> : vector<16xf32>
    %60 = vector.multi_reduction <maximumf>, %59, %cst_11 [0] : vector<4x16xf32> to vector<16xf32>
    %61 = vector.shape_cast %60 : vector<16xf32> to vector<1x16xf32>
    %62 = vector.broadcast %61 : vector<1x16xf32> to vector<4x16xf32>
    %63 = arith.subf %59, %62 : vector<4x16xf32>
    %64 = math.exp %63 : vector<4x16xf32>
    %cst_12 = arith.constant dense<0.000000e+00> : vector<16xf32>
    %65 = vector.multi_reduction <add>, %64, %cst_12 [0] : vector<4x16xf32> to vector<16xf32>
    %66 = vector.shape_cast %65 : vector<16xf32> to vector<1x16xf32>
    %cst_13 = arith.constant 1.000000e+00 : f32
    %67 = vector.broadcast %cst_13 : f32 to vector<1x16xf32>
    %68 = arith.divf %67, %66 : vector<1x16xf32>
    %69 = vector.broadcast %68 : vector<1x16xf32> to vector<4x16xf32>
    %70 = arith.mulf %64, %69 : vector<4x16xf32>
    %c0_14 = arith.constant 0 : index
    %c0_15 = arith.constant 0 : index
    %c0_16 = arith.constant 0 : index
    %71 = vector.load %arg7[%c0_14, %c0_15, %c0_16] : memref<1x4x16xf32, #tpu.memory_space<vmem>>, vector<1x4x16xf32>
    %72 = vector.shape_cast %71 : vector<1x4x16xf32> to vector<4x16xf32>
    %73 = vector.shape_cast %70 : vector<4x16xf32> to vector<1x4x16xf32>
    tpu.vector_store %arg7[%c0_14, %c0_15, %c0_16], %73 {strides = array<i32>} : memref<1x4x16xf32, #tpu.memory_space<vmem>>, vector<1x4x16xf32>,
    return
  }
  func.func @transform_0(%arg0: i32, %arg1: i32) -> (i32, i32, i32) {
    %c0_i32 = arith.constant 0 : i32
    %c0_i32_0 = arith.constant 0 : i32
    return %arg0, %c0_i32, %arg1 : i32, i32, i32
  }
  func.func @transform_1(%arg0: i32, %arg1: i32) -> (i32, i32) {
    %c0_i32 = arith.constant 0 : i32
    %c0_i32_0 = arith.constant 0 : i32
    %c0_i32_1 = arith.constant 0 : i32
    return %c0_i32, %c0_i32_0 : i32, i32
  }
  func.func @transform_2(%arg0: i32, %arg1: i32) -> (i32, i32) {
    %c0_i32 = arith.constant 0 : i32
    %c0_i32_0 = arith.constant 0 : i32
    %c0_i32_1 = arith.constant 0 : i32
    return %c0_i32, %c0_i32_0 : i32, i32
  }
  func.func @transform_3(%arg0: i32, %arg1: i32) -> (i32, i32) {
    %c0_i32 = arith.constant 0 : i32
    %c0_i32_0 = arith.constant 0 : i32
    %c0_i32_1 = arith.constant 0 : i32
    return %c0_i32, %c0_i32_0 : i32, i32
  }
  func.func @transform_4(%arg0: i32, %arg1: i32) -> (i32, i32) {
    %c0_i32 = arith.constant 0 : i32
    %c0_i32_0 = arith.constant 0 : i32
    %c0_i32_1 = arith.constant 0 : i32
    return %c0_i32, %c0_i32_0 : i32, i32
  }
  func.func @transform_5(%arg0: i32, %arg1: i32) -> (i32, i32, i32) {
    %c0_i32 = arith.constant 0 : i32
    %c0_i32_0 = arith.constant 0 : i32
    return %arg0, %c0_i32, %arg1 : i32, i32, i32
  }
}

</mosaic_0001>

<llo_original>
// kernel: tpu_custom_call.1
$region0: #{tpu_custom_call.1}
  #allocation0 [shape = 'u32[]', space=smem, size = 0x4, offset = 0x4, fixed_abs, tag = 'smem constant byte address 0x4 - core index']
  #allocation1 [shape = 'u32[144,128]{1,0:T(1,128)}', space=vmem, size = 0x12000, scoped, tag = 'internal scratch']
  %s0 = inlined_call_operand.vmem [shape: f32[2,4,16], index: 0, kind: input, shape index: {}]
  %s1 = inlined_call_operand.vmem [shape: f32[4,4], index: 1, kind: input, shape index: {}]
  %s2 = inlined_call_operand.vmem [shape: f32[4,1], index: 2, kind: input, shape index: {}]
  %s3 = inlined_call_operand.vmem [shape: f32[4,4], index: 3, kind: input, shape index: {}]
  %s4 = inlined_call_operand.vmem [shape: f32[4,1], index: 4, kind: input, shape index: {}]
  %s5 = inlined_call_operand.hbm [shape: f32[2,4,16], index: 5, kind: output, shape index: {}]
  %s6 = sld [smem:[#allocation0]]
  $region53: #{tpu_custom_call.1} parent=0
    _
  %s8 = ssub.s32 1, %s6
  %s9 = scalar_select 0, %s8, %s6
  $region1: #{tpu_custom_call.1} parent=0
    #allocation2 [shape = 'u8[4096]{0}', space=vmem, size = 0x1000, scoped, tag = 'output window, operand 0']
    #allocation3 [shape = 's32[2]{0}', space=sflag, size = 0x8, scoped, tag = 'scoped memory for tpu_custom_call.1']
    %10 = vsyncpa [#allocation3], 0
    %s11 = scalar_lea.sflag [#allocation3], 1
    %12 = vsyncpa %s11, 0
    loop: start=0, step=1, limit=4
    $region2: #{tpu_custom_call.1} parent=1 // loop_pre_header
      _
    $region3: #{tpu_custom_call.1} parent=1 // loop_header
      %s14 = sphi 0, %s18
      %p15 = scmp.ge.s32.totalorder %s14, 4
      %s21 = sphi 0, %s33
      %s22 = sphi 0, %s29
      %s23 = sphi 0, %s21
      %s24 = sphi 0, %s22
      %s25 = sphi 0, %s23
      %s26 = sphi 0, %s24
      %s38 = sphi 0, %s40
      %s41 = sphi 0, %s38
      %s42 = sphi 0, %s41
      %s58 = sphi 0, %s42
      %s62 = sphi 0, %s62
      %s64 = sphi 0, %s62
      %s65 = sphi 0, %s64
      %s79 = sphi 0, %s65
      %s83 = sphi 0, %s83
      %s85 = sphi 0, %s83
      %s86 = sphi 0, %s85
      %s100 = sphi 0, %s86
      %s104 = sphi 0, %s104
      %s106 = sphi 0, %s104
      %s107 = sphi 0, %s106
      %s121 = sphi 0, %s107
      %s125 = sphi 0, %s125
      %s127 = sphi 0, %s125
      %s128 = sphi 0, %s127
      %s142 = sphi 0, %s128
      %s150 = sphi 0, %s152
      %s153 = sphi 0, %s150
      %s154 = sphi 0, %s153
      %s170 = sphi 0, %s154
    $region4: #{tpu_custom_call.1} parent=1 // loop_header_branch
      %17 = sbr.rel (%p15) target = $region8
    $region5: #{tpu_custom_call.1} parent=1 // loop_body
      %s19 = ssub.s32 %s14, 1
      %s20 = ssub.s32 %s14, 2
      %s27 = sadd.s32 1, %s22
      %p28 = scmp.ge.s32.totalorder %s27, 1
      %s29 = scalar_select %p28, 0, %s27
      %s30 = sadd.s32 1, %s21
      %s31 = scalar_select %p28, %s30, %s21
      %p32 = scmp.ge.s32.totalorder %s31, 2
      %s33 = scalar_select %p32, 0, %s31
      %s34 = ssub.s32 %s21, %s33
      %s35 = ssub.s32 %s22, %s29
      %s36 = sor.u32 %s34, %s35
      %p37 = scmp.eq.s32.totalorder %s36, 0
      %s39 = sadd.s32 %s38, 1
      %s40 = scalar_select %p37, %s38, %s39
      %p43 = pneg %p37
      %p44 = scmp.eq.s32.totalorder %s14, 1
      %p45 = por %p43, %p44
      %p46 = scmp.ne.s32.totalorder %s38, %s41
      %p47 = scmp.eq.s32.totalorder %s14, 0
      %p48 = por %p46, %p47
      %p49 = scmp.ne.s32.totalorder %s38, %s41
      %p50 = scmp.eq.s32.totalorder %s19, 1
      %p51 = por %p49, %p50
      %p52 = scmp.ne.s32.totalorder %s41, %s42
      %p53 = scmp.eq.s32.totalorder %s19, 0
      %p54 = por %p52, %p53
      %p55 = scmp.ne.s32.totalorder %s41, %s42
      %p56 = scmp.eq.s32.totalorder %s20, 1
      %p57 = por %p55, %p56
      %p59 = scmp.ne.s32.totalorder %s42, %s58
      %p60 = scmp.eq.s32.totalorder %s20, 0
      %p61 = por %p59, %p60
      %s63 = sadd.s32 %s62, 1
      %p66 = scmp.eq.s32.totalorder %s14, 1
      %p67 = scmp.ne.s32.totalorder %s62, %s64
      %p68 = scmp.eq.s32.totalorder %s14, 0
      %p69 = por %p67, %p68
      %p70 = scmp.ne.s32.totalorder %s62, %s64
      %p71 = scmp.eq.s32.totalorder %s19, 1
      %p72 = por %p70, %p71
      %p73 = scmp.ne.s32.totalorder %s64, %s65
      %p74 = scmp.eq.s32.totalorder %s19, 0
      %p75 = por %p73, %p74
      %p76 = scmp.ne.s32.totalorder %s64, %s65
      %p77 = scmp.eq.s32.totalorder %s20, 1
      %p78 = por %p76, %p77
      %p80 = scmp.ne.s32.totalorder %s65, %s79
      %p81 = scmp.eq.s32.totalorder %s20, 0
      %p82 = por %p80, %p81
      %s84 = sadd.s32 %s83, 1
      %p87 = scmp.eq.s32.totalorder %s14, 1
      %p88 = scmp.ne.s32.totalorder %s83, %s85
      %p89 = scmp.eq.s32.totalorder %s14, 0
      %p90 = por %p88, %p89
      %p91 = scmp.ne.s32.totalorder %s83, %s85
      %p92 = scmp.eq.s32.totalorder %s19, 1
      %p93 = por %p91, %p92
      %p94 = scmp.ne.s32.totalorder %s85, %s86
      %p95 = scmp.eq.s32.totalorder %s19, 0
      %p96 = por %p94, %p95
      %p97 = scmp.ne.s32.totalorder %s85, %s86
      %p98 = scmp.eq.s32.totalorder %s20, 1
      %p99 = por %p97, %p98
      %p101 = scmp.ne.s32.totalorder %s86, %s100
      %p102 = scmp.eq.s32.totalorder %s20, 0
      %p103 = por %p101, %p102
      %s105 = sadd.s32 %s104, 1
      %p108 = scmp.eq.s32.totalorder %s14, 1
      %p109 = scmp.ne.s32.totalorder %s104, %s106
      %p110 = scmp.eq.s32.totalorder %s14, 0
      %p111 = por %p109, %p110
      %p112 = scmp.ne.s32.totalorder %s104, %s106
      %p113 = scmp.eq.s32.totalorder %s19, 1
      %p114 = por %p112, %p113
      %p115 = scmp.ne.s32.totalorder %s106, %s107
      %p116 = scmp.eq.s32.totalorder %s19, 0
      %p117 = por %p115, %p116
      %p118 = scmp.ne.s32.totalorder %s106, %s107
      %p119 = scmp.eq.s32.totalorder %s20, 1
      %p120 = por %p118, %p119
      %p122 = scmp.ne.s32.totalorder %s107, %s121
      %p123 = scmp.eq.s32.totalorder %s20, 0
      %p124 = por %p122, %p123
      %s126 = sadd.s32 %s125, 1
      %p129 = scmp.eq.s32.totalorder %s14, 1
      %p130 = scmp.ne.s32.totalorder %s125, %s127
      %p131 = scmp.eq.s32.totalorder %s14, 0
      %p132 = por %p130, %p131
      %p133 = scmp.ne.s32.totalorder %s125, %s127
      %p134 = scmp.eq.s32.totalorder %s19, 1
      %p135 = por %p133, %p134
      %p136 = scmp.ne.s32.totalorder %s127, %s128
      %p137 = scmp.eq.s32.totalorder %s19, 0
      %p138 = por %p136, %p137
      %p139 = scmp.ne.s32.totalorder %s127, %s128
      %p140 = scmp.eq.s32.totalorder %s20, 1
      %p141 = por %p139, %p140
      %p143 = scmp.ne.s32.totalorder %s128, %s142
      %p144 = scmp.eq.s32.totalorder %s20, 0
      %p145 = por %p143, %p144
      %s146 = ssub.s32 %s21, %s33
      %s147 = ssub.s32 %s22, %s29
      %s148 = sor.u32 %s146, %s147
      %p149 = scmp.eq.s32.totalorder %s148, 0
      %s151 = sadd.s32 %s150, 1
      %s152 = scalar_select %p149, %s150, %s151
      %p155 = pneg %p149
      %p156 = scmp.eq.s32.totalorder %s14, 1
      %p157 = por %p155, %p156
      %p158 = scmp.ne.s32.totalorder %s150, %s153
      %p159 = scmp.eq.s32.totalorder %s14, 0
      %p160 = por %p158, %p159
      %p161 = scmp.ne.s32.totalorder %s150, %s153
      %p162 = scmp.eq.s32.totalorder %s19, 1
      %p163 = por %p161, %p162
      %p164 = scmp.ne.s32.totalorder %s153, %s154
      %p165 = scmp.eq.s32.totalorder %s19, 0
      %p166 = por %p164, %p165
      %p167 = scmp.ne.s32.totalorder %s153, %s154
      %p168 = scmp.eq.s32.totalorder %s20, 1
      %p169 = por %p167, %p168
      %p171 = scmp.ne.s32.totalorder %s154, %s170
      %p172 = scmp.eq.s32.totalorder %s20, 0
      %p173 = por %p171, %p172
      %p174 = scmp.le.s32.totalorder 1, %s14
      %p175 = scmp.lt.s32.totalorder %s14, 3
      %p176 = pnand %p174, %p175
      %p177 = pneg %p176
      // Predicated region
      $region9: #{tpu_custom_call.1} parent=5 // pred_check
        _
      $region10: #{tpu_custom_call.1} parent=5 // pred_check_branch
        %179 = sbr.rel (%p176) target = $region12
      $region11: #{tpu_custom_call.1} parent=5 // pred_region
        %s180 = ssub.s32 %s14, 1
        // Predicated region
        $region13: #{tpu_custom_call.1} parent=11 // pred_check
          %p181 = pneg %p75
        $region14: #{tpu_custom_call.1} parent=11 // pred_check_branch
          %183 = sbr.rel (%p181) target = $region16
        $region15: #{tpu_custom_call.1} parent=11 // pred_region
          _
        $region16: #{tpu_custom_call.1} parent=11 // pred_fallthru
          _
        // Predicated region
        $region17: #{tpu_custom_call.1} parent=11 // pred_check
          %p184 = pneg %p96
        $region18: #{tpu_custom_call.1} parent=11 // pred_check_branch
          %186 = sbr.rel (%p184) target = $region20
        $region19: #{tpu_custom_call.1} parent=11 // pred_region
          _
        $region20: #{tpu_custom_call.1} parent=11 // pred_fallthru
          _
        // Predicated region
        $region21: #{tpu_custom_call.1} parent=11 // pred_check
          %p187 = pneg %p117
        $region22: #{tpu_custom_call.1} parent=11 // pred_check_branch
          %189 = sbr.rel (%p187) target = $region24
        $region23: #{tpu_custom_call.1} parent=11 // pred_region
          _
        $region24: #{tpu_custom_call.1} parent=11 // pred_fallthru
          _
        // Predicated region
        $region25: #{tpu_custom_call.1} parent=11 // pred_check
          %p190 = pneg %p138
        $region26: #{tpu_custom_call.1} parent=11 // pred_check_branch
          %192 = sbr.rel (%p190) target = $region28
        $region27: #{tpu_custom_call.1} parent=11 // pred_region
          _
        $region28: #{tpu_custom_call.1} parent=11 // pred_fallthru
          _
      $region12: #{tpu_custom_call.1} parent=5 // pred_fallthru
        _
      %p193 = scmp.lt.s32.totalorder %s14, 2
      // Predicated region
      $region29: #{tpu_custom_call.1} parent=5 // pred_check
        %p194 = pneg %p193
      $region30: #{tpu_custom_call.1} parent=5 // pred_check_branch
        %196 = sbr.rel (%p194) target = $region32
      $region31: #{tpu_custom_call.1} parent=5 // pred_region
        // Predicated region
        $region33: #{tpu_custom_call.1} parent=31 // pred_check
          %p197 = pneg %p48
        $region34: #{tpu_custom_call.1} parent=31 // pred_check_branch
          %199 = sbr.rel (%p197) target = $region36
        $region35: #{tpu_custom_call.1} parent=31 // pred_region
          %p200 = scmp.lt.s32.totalorder %s21, 1
          %s201 = scalar_select %p200, %s21, 1
          %p202 = scmp.lt.s32.totalorder %s22, 0
          %s203 = scalar_select %p202, %s22, 0
          %s204 = sadd.s32 %s203, %s201
          %s205 = smul.addr %s204, 4
          %s206 = scalar_lea.vmem %s0, %s205
        $region36: #{tpu_custom_call.1} parent=31 // pred_fallthru
          _
      $region32: #{tpu_custom_call.1} parent=5 // pred_fallthru
        _
      %p207 = scmp.le.s32.totalorder 1, %s14
      %p208 = scmp.lt.s32.totalorder %s14, 3
      %p209 = pnand %p207, %p208
      %p210 = pneg %p209
      // Predicated region
      $region37: #{tpu_custom_call.1} parent=5 // pred_check
        _
      $region38: #{tpu_custom_call.1} parent=5 // pred_check_branch
        %212 = sbr.rel (%p209) target = $region40
      $region39: #{tpu_custom_call.1} parent=5 // pred_region
        %s213 = ssub.s32 %s14, 1
        %p214 = scmp.lt.s32.totalorder %s23, 1
        %s215 = scalar_select %p214, %s23, 1
        %p216 = scmp.lt.s32.totalorder %s24, 0
        %s217 = scalar_select %p216, %s24, 0
        %s218 = sadd.s32 %s217, %s215
        %s219 = smul.addr %s218, 4
        %s220 = scalar_lea.vmem %s0, %s219
        %p221 = pneg %p54
        %p222 = pneg %p51
        %p223 = pneg %p75
        %p224 = pneg %p72
        %p225 = pneg %p96
        %p226 = pneg %p93
        %p227 = pneg %p117
        %p228 = pneg %p114
        %p229 = pneg %p138
        %p230 = pneg %p135
        %p231 = pneg %p166
        %p232 = pneg %p163
        %s233 = sand.u32 %s153, 1
        %s234 = scalar_lea.sflag [#allocation3], %s233
        %s235 = sand.u32 %s153, 1
        %s236 = smul.addr %s235, 4
        %s237 = scalar_lea.vmem [#allocation2], %s236
        %p238 = scmp.lt.s32.totalorder %s23, 1
        %s239 = scalar_select %p238, %s23, 1
        %p240 = scmp.lt.s32.totalorder %s24, 0
        %s241 = scalar_select %p240, %s24, 0
        %s242 = sadd.s32 %s241, %s239
        %s243 = smul.addr %s242, 4
        %s244 = scalar_lea.vmem %s0, %s243
        %v245 = vld [vmem:[%s244] sm:$0xf]
        %v246 = vmax.f32 %v245, 0.0
        %v247 = vld [vmem:[%s1] sm:$0xf]
        %v248 = vld [vmem:[%s2] sm:$0xf]
        %250 = vset.pattern.permute.xlu0 0
        %251 = vperm.xlu0 %250, %v247
        %v252 = vpop.permute.xlu0 %251
        %v254 = vlaneseq
        %v255 = vshrl.u32 %v254, 7
        %v256 = vsub.s32 0, %v255
        %v257 = vrot.slane %v246, %v256
        %v258 = vmul.f32 %v252, %v257
        %259 = vset.pattern.permute.xlu0 1
        %260 = vperm.xlu0 %259, %v247
        %v261 = vpop.permute.xlu0 %260
        %v263 = vlaneseq
        %v264 = vshrl.u32 %v263, 7
        %v265 = vsub.s32 1, %v264
        %v266 = vrot.slane %v246, %v265
        %v267 = vmul.f32 %v261, %v266
        %v268 = vadd.f32 %v258, %v267
        %269 = vset.pattern.permute.xlu0 2
        %270 = vperm.xlu0 %269, %v247
        %v271 = vpop.permute.xlu0 %270
        %v273 = vlaneseq
        %v274 = vshrl.u32 %v273, 7
        %v275 = vsub.s32 2, %v274
        %v276 = vrot.slane %v246, %v275
        %v277 = vmul.f32 %v271, %v276
        %v278 = vadd.f32 %v268, %v277
        %279 = vset.pattern.permute.xlu0 3
        %280 = vperm.xlu0 %279, %v247
        %v281 = vpop.permute.xlu0 %280
        %v283 = vlaneseq
        %v284 = vshrl.u32 %v283, 7
        %v285 = vsub.s32 3, %v284
        %v286 = vrot.slane %v246, %v285
        %v287 = vmul.f32 %v281, %v286
        %v288 = vadd.f32 %v278, %v287
        %290 = vset.pattern.permute.xlu0 0
        %291 = vperm.xlu0 %290, %v248
        %v292 = vpop.permute.xlu0 %291
        %v294 = vadd.f32 %v288, %v292
        %v295 = vmax.f32 %v294, 0.0
        %v296 = vld [vmem:[%s3] sm:$0xf]
        %v297 = vld [vmem:[%s4] sm:$0xf]
        %299 = vset.pattern.permute.xlu0 0
        %300 = vperm.xlu0 %299, %v296
        %v301 = vpop.permute.xlu0 %300
        %v303 = vlaneseq
        %v304 = vshrl.u32 %v303, 7
        %v305 = vsub.s32 0, %v304
        %v306 = vrot.slane %v295, %v305
        %v307 = vmul.f32 %v301, %v306
        %308 = vset.pattern.permute.xlu0 1
        %309 = vperm.xlu0 %308, %v296
        %v310 = vpop.permute.xlu0 %309
        %v312 = vlaneseq
        %v313 = vshrl.u32 %v312, 7
        %v314 = vsub.s32 1, %v313
        %v315 = vrot.slane %v295, %v314
        %v316 = vmul.f32 %v310, %v315
        %v317 = vadd.f32 %v307, %v316
        %318 = vset.pattern.permute.xlu0 2
        %319 = vperm.xlu0 %318, %v296
        %v320 = vpop.permute.xlu0 %319
        %v322 = vlaneseq
        %v323 = vshrl.u32 %v322, 7
        %v324 = vsub.s32 2, %v323
        %v325 = vrot.slane %v295, %v324
        %v326 = vmul.f32 %v320, %v325
        %v327 = vadd.f32 %v317, %v326
        %328 = vset.pattern.permute.xlu0 3
        %329 = vperm.xlu0 %328, %v296
        %v330 = vpop.permute.xlu0 %329
        %v332 = vlaneseq
        %v333 = vshrl.u32 %v332, 7
        %v334 = vsub.s32 3, %v333
        %v335 = vrot.slane %v295, %v334
        %v336 = vmul.f32 %v330, %v335
        %v337 = vadd.f32 %v327, %v336
        %339 = vset.pattern.permute.xlu0 0
        %340 = vperm.xlu0 %339, %v297
        %v341 = vpop.permute.xlu0 %340
        %v343 = vadd.f32 %v337, %v341
        %vm344 = vcmask 125952
        %v345 = vsel %vm344, %v343, -inf
        %v346 = vrot.slane %v345, 4
        %v347 = vmax.f32 %v345, %v346
        %v348 = vrot.slane %v347, 2
        %v349 = vmax.f32 %v347, %v348
        %v350 = vrot.slane %v349, 1
        %v351 = vmax.f32 %v349, %v350
        %v352 = vsub.f32 %v343, %v351
        %v353 = vmul.f32 %v352, 1.442695
        %v354 = vpow.pop %v353
        %v355 = vsel %vm344, %v354, 0.0
        %v356 = vrot.slane %v355, 4
        %v357 = vadd.f32 %v355, %v356
        %v358 = vrot.slane %v357, 2
        %v359 = vadd.f32 %v357, %v358
        %v360 = vrot.slane %v359, 1
        %v361 = vadd.f32 %v359, %v360
        %v362 = vrcp.pop %v361
        %v363 = vmul.f32 1.0, %v362
        %v364 = vmul.f32 %v354, %v363
        %365 = vst.msk [vmem:[%s237] sm:$0xf] %vm344, %v364
        %s366 = sand.u32 %s153, 1
        %s367 = scalar_lea.sflag [#allocation3], %s366
        %s368 = sand.u32 %s153, 1
        %s369 = smul.addr %s368, 4
        %s370 = scalar_lea.vmem [#allocation2], %s369
        // Predicated region
        $region41: #{tpu_custom_call.1} parent=39 // pred_check
          %p371 = pneg %p163
        $region42: #{tpu_custom_call.1} parent=39 // pred_check_branch
          %373 = sbr.rel (%p371) target = $region44
        $region43: #{tpu_custom_call.1} parent=39 // pred_region
          %s375 = ssub.s32 64, 64
          %376 = vsyncadd %s367, %s375
          %s377 = sadd.s32 %s24, %s23
          %s378 = smul.addr %s377, 64
          %s379 = scalar_lea.hbm %s5, %s378
          %s381 = sshll.u32 %s370, 4
          %s382 = int_to_ptr.vmem [resolvable:$true] %s381
          %384 = dma.vmem_to_hbm [thread:$0]  %s382, 64, %s379, %s367
        $region44: #{tpu_custom_call.1} parent=39 // pred_fallthru
          _
      $region40: #{tpu_custom_call.1} parent=5 // pred_fallthru
        _
      %p385 = scmp.le.s32.totalorder 2, %s14
      // Predicated region
      $region45: #{tpu_custom_call.1} parent=5 // pred_check
        %p386 = pneg %p385
      $region46: #{tpu_custom_call.1} parent=5 // pred_check_branch
        %388 = sbr.rel (%p386) target = $region48
      $region47: #{tpu_custom_call.1} parent=5 // pred_region
        %s389 = ssub.s32 %s14, 2
        // Predicated region
        $region49: #{tpu_custom_call.1} parent=47 // pred_check
          %p390 = pneg %p169
        $region50: #{tpu_custom_call.1} parent=47 // pred_check_branch
          %392 = sbr.rel (%p390) target = $region52
        $region51: #{tpu_custom_call.1} parent=47 // pred_region
          %s393 = sand.u32 %s154, 1
          %s394 = scalar_lea.sflag [#allocation3], %s393
          %s395 = sand.u32 %s154, 1
          %s396 = smul.addr %s395, 4
          %s397 = scalar_lea.vmem [#allocation2], %s396
          %398 = dma.done %s394, 64
        $region52: #{tpu_custom_call.1} parent=47 // pred_fallthru
          _
      $region48: #{tpu_custom_call.1} parent=5 // pred_fallthru
        _
    $region6: #{tpu_custom_call.1} parent=1 // loop_footer
      %s18 = sadd.s32 1, %s14
    $region7: #{tpu_custom_call.1} parent=1 // loop_footer_branch
      %13 = sbr.rel target = $region3
    $region8: #{tpu_custom_call.1} parent=1 // loop_exit
      _
    %399 = vsyncpa [#allocation3], 1
    %s400 = scalar_lea.sflag [#allocation3], 1
    %401 = vsyncpa %s400, 1

</llo_original>
